<compile_context>
chip_gen: v6e
topology: v6e:2x2x1
jax: 0.10.0
libtpu: 0.0.40
codegen_flags: <defaults>
</compile_context>

<pallas_src>
import jax
import jax.numpy as jnp
from jax.experimental import pallas as pl
from jax.experimental.pallas import tpu as pltpu

# Deterministic "parameters" of the growth function (synthetic, not a checkpoint).
MU = 0.15
SIGMA = 0.015
K = -0.5 / (SIGMA * SIGMA)  # trace-time constant; avoids in-kernel divide


def growth_kernel(x_ref, o_ref):
    # Load in the I/O dtype, compute in f32 (safe on v5e: no bf16 VPU/EUP),
    # cast back for the store.  exp goes to the EUP slot; everything else VPU.
    x = x_ref[...].astype(jnp.float32)
    t = x - MU
    o_ref[...] = (2.0 * jnp.exp(t * t * K) - 1.0).astype(o_ref.dtype)


def _hw_params():
    """Returns (tile_budget_bytes, vmem_limit_bytes_or_None, num_tensorcores)."""
    try:
        vmem_cap = int(pltpu.get_tpu_info().vmem_capacity_bytes)
    except Exception:
        # Unknown generation: 4 double-buffers x 3 MiB = 12 MiB stays under
        # v5e's 16 MiB scoped-VMEM default without touching vmem_limit_bytes.
        return 3 * 1024 * 1024, None, 1
    if vmem_cap <= 64 * 1024 * 1024:
        # v7x-like: 64 MiB VMEM / TC, 3.2 TB/s HBM, 2 TensorCores per chip.
        # Bigger tiles amortize the ~0.35 us per-step overhead; 2*(in+out)*8 MiB
        # = 32 MiB of buffers < 48 MiB scoped limit < 64 MiB physical.
        return 8 * 1024 * 1024, 48 * 1024 * 1024, 2
    # v5e / v6e: 128 MiB VMEM, single TensorCore. Raise the scoped limit past
    # v5e's 16 MiB default so 4 MiB tiles (16 MiB of buffers) fit with headroom.
    return 4 * 1024 * 1024, 64 * 1024 * 1024, 1


def abstract_gf_forward(x):
    """Applies the growth function elementwise to x (any shape), via Pallas."""
    orig_shape = x.shape
    io_dtype = x.dtype
    # TODO(synk): for integer dtypes the [-1, 1] output collapses to {-1, 0, 1}
    # on the in-kernel cast back; the abstract base class defines no contract
    # for non-float inputs.

    xf = x.reshape(-1)
    n = xf.shape[0]
    itemsize = jnp.dtype(io_dtype).itemsize
    tile_budget, vmem_limit, num_tc = _hw_params()

    # Lane-dense layout with no wrapper-side pad/slice HBM passes whenever
    # possible: widest lane width in {1024, 512, 256, 128} that divides n.
    lane = None
    for cand in (1024, 512, 256, 128):
        if n % cand == 0:
            lane = cand
            break
    if lane is None:
        # Awkward size: minimal pad to a multiple of 128 lanes (only case that
        # pays an extra pad + slice pass).
        lane = 128
        n_padded = -(-n // lane) * lane
        xf = jnp.pad(xf, (0, n_padded - n))
    else:
        n_padded = n

    rows = n_padded // lane
    x2d = xf.reshape(rows, lane)

    # Generation-aware tile rows (multiple of 8 for sublane alignment).
    target_rows = max(8, (tile_budget // (lane * itemsize)) // 8 * 8)

    if rows > target_rows:
        tile_rows = target_rows
    else:
        # Single block equal to the full array dims is always legal, even when
        # rows is not a multiple of 8.
        tile_rows = rows
        if (num_tc >= 2 and rows >= 16
                and rows * lane * itemsize >= (1 << 20)):
            # v7x megacore: give both TensorCores a grid step on mid-size inputs.
            half = -(-rows // 2)
            tile_rows = -(-half // 8) * 8

    # Non-divisible grid is fine: Pallas masks the trailing partial block
    # (pointwise op, so garbage reads in the padded region are harmless).
    grid = (pl.cdiv(rows, tile_rows),)

    cp_kwargs = dict(dimension_semantics=("parallel",))
    if vmem_limit is not None:
        cp_kwargs["vmem_limit_bytes"] = vmem_limit

    out2d = pl.pallas_call(
        growth_kernel,
        out_shape=jax.ShapeDtypeStruct((rows, lane), io_dtype),
        grid=grid,
        in_specs=[pl.BlockSpec((tile_rows, lane), lambda i: (i, 0))],
        out_specs=pl.BlockSpec((tile_rows, lane), lambda i: (i, 0)),
        compiler_params=pltpu.CompilerParams(**cp_kwargs),
        cost_estimate=pl.CostEstimate(
            flops=5 * rows * lane,
            transcendentals=rows * lane,
            bytes_accessed=2 * rows * lane * itemsize,
        ),
    )(x2d)

    out = out2d.reshape(-1)
    if n_padded != n:
        out = out[:n]
    return out.reshape(orig_shape)


def _reference(x):
    z = (x.astype(jnp.float32) - MU) / SIGMA
    return (2.0 * jnp.exp(-0.5 * z * z) - 1.0).astype(x.dtype)


if __name__ == "__main__":
    key = jax.random.PRNGKey(0)
    # small NCHW-style input, consistent with an image-state growth function
    x = jax.random.uniform(key, (2, 4, 16, 16), dtype=jnp.float32)

    y = abstract_gf_forward(x)
    y = jax.block_until_ready(y)

    y_ref = _reference(x)
    assert y.shape == x.shape and y.dtype == x.dtype
    assert jnp.allclose(y, y_ref, atol=1e-5, rtol=1e-5)

    # bf16 path (kept bf16 through the kernel; f32 intermediates inside)
    xb = x.astype(jnp.bfloat16)
    yb = jax.block_until_ready(abstract_gf_forward(xb))
    assert yb.shape == xb.shape and yb.dtype == xb.dtype
    assert jnp.allclose(yb.astype(jnp.float32), _reference(xb).astype(jnp.float32),
                        atol=2e-2, rtol=2e-2)

    # the show() contract: G on linspace(0, 1) (50 points -> exercises pad fallback)
    xl = jnp.linspace(0.0, 1.0, 50, dtype=jnp.float32)
    yl = jax.block_until_ready(abstract_gf_forward(xl))
    assert yl.shape == xl.shape and yl.dtype == xl.dtype
    assert jnp.allclose(yl, _reference(xl), atol=1e-5, rtol=1e-5)

    print("KERNEL_OK")
</pallas_src>

<mosaic_0001>
module attributes {stable_mosaic.version = 11 : i64} {
  func.func @growth_kernel(%arg0: i32, %arg1: memref<2x1024xf32, #tpu.memory_space<vmem>>, %arg2: memref<2x1024xf32, #tpu.memory_space<vmem>>) attributes {dimension_semantics = [#tpu.dimension_semantics<parallel>], iteration_bounds = array<i64: 1>, scalar_prefetch = 0 : i64, scratch_operands = 0 : i64, tpu.core_type = #tpu.core_type<tc>, window_params = [{transform_indices = @transform_0, window_bounds = array<i64: 2, 1024>}, {transform_indices = @transform_1, window_bounds = array<i64: 2, 1024>}]} {
    %c0 = arith.constant 0 : index
    %c0_0 = arith.constant 0 : index
    %0 = vector.load %arg1[%c0, %c0_0] : memref<2x1024xf32, #tpu.memory_space<vmem>>, vector<2x1024xf32>
    %cst = arith.constant 1.500000e-01 : f32
    %1 = vector.broadcast %cst : f32 to vector<2x1024xf32>
    %2 = arith.subf %0, %1 : vector<2x1024xf32>
    %3 = arith.mulf %2, %2 : vector<2x1024xf32>
    %cst_1 = arith.constant -2222.22217 : f32
    %4 = vector.broadcast %cst_1 : f32 to vector<2x1024xf32>
    %5 = arith.mulf %3, %4 : vector<2x1024xf32>
    %6 = math.exp %5 : vector<2x1024xf32>
    %cst_2 = arith.constant 2.000000e+00 : f32
    %7 = vector.broadcast %cst_2 : f32 to vector<2x1024xf32>
    %8 = arith.mulf %7, %6 : vector<2x1024xf32>
    %cst_3 = arith.constant 1.000000e+00 : f32
    %9 = vector.broadcast %cst_3 : f32 to vector<2x1024xf32>
    %10 = arith.subf %8, %9 : vector<2x1024xf32>
    %c0_4 = arith.constant 0 : index
    %c0_5 = arith.constant 0 : index
    %11 = vector.load %arg2[%c0_4, %c0_5] : memref<2x1024xf32, #tpu.memory_space<vmem>>, vector<2x1024xf32>
    tpu.vector_store %arg2[%c0_4, %c0_5], %10 {strides = array<i32>} : memref<2x1024xf32, #tpu.memory_space<vmem>>, vector<2x1024xf32>,
    return
  }
  func.func @transform_0(%arg0: i32) -> (i32, i32) {
    %c0_i32 = arith.constant 0 : i32
    %c0_i32_0 = arith.constant 0 : i32
    return %arg0, %c0_i32 : i32, i32
  }
  func.func @transform_1(%arg0: i32) -> (i32, i32) {
    %c0_i32 = arith.constant 0 : i32
    %c0_i32_0 = arith.constant 0 : i32
    return %arg0, %c0_i32 : i32, i32
  }
}

</mosaic_0001>

<llo_original>
// kernel: tpu_custom_call.1
$region0: #{tpu_custom_call.1}
  #allocation0 [shape = 'u32[]', space=smem, size = 0x4, offset = 0x4, fixed_abs, tag = 'smem constant byte address 0x4 - core index']
  #allocation1 [shape = 'u32[144,128]{1,0:T(1,128)}', space=vmem, size = 0x12000, scoped, tag = 'internal scratch']
  %s0 = inlined_call_operand.hbm [shape: f32[2,1024], index: 0, kind: input, shape index: {}]
  %s1 = inlined_call_operand.hbm [shape: f32[2,1024], index: 1, kind: output, shape index: {}]
  %s2 = sld [smem:[#allocation0]]
  $region18: #{tpu_custom_call.1} parent=0
    _
  %s4 = ssub.s32 1, %s2
  %s5 = scalar_select 0, %s4, %s2
  $region1: #{tpu_custom_call.1} parent=0
    #allocation2 [shape = 'u8[8192]{0}', space=vmem, size = 0x2000, scoped, tag = 'input window, operand 0, single buffered']
    #allocation3 [shape = 's32[1]{0}', space=sflag, size = 0x4, scoped, tag = 'scoped memory for tpu_custom_call.1']
    #allocation4 [shape = 's32[1]{0}', space=sflag, size = 0x4, scoped, tag = 'scoped memory for tpu_custom_call.1']
    #allocation5 [shape = 'u8[8192]{0}', space=vmem, size = 0x2000, scoped, tag = 'output window, operand 0, single buffered']
    %6 = vsyncpa [#allocation3], 0
    %7 = vsyncpa [#allocation4], 0
    // Predicated region
    $region2: #{tpu_custom_call.1} parent=1 // pred_check
      _
    $region3: #{tpu_custom_call.1} parent=1 // pred_check_branch
      %9 = sbr.rel (0) target = $region5
    $region4: #{tpu_custom_call.1} parent=1 // pred_region
      %s11 = ssub.s32 256, 256
      %12 = vsyncadd [#allocation3], %s11
      %s14 = sshll.u32 [#allocation2], 4
      %s15 = int_to_ptr.vmem [resolvable:$true] %s14
      %17 = dma.hbm_to_vmem [thread:$0]  %s0, 256, %s15, [#allocation3]
    $region5: #{tpu_custom_call.1} parent=1 // pred_fallthru
      _
    // Predicated region
    $region6: #{tpu_custom_call.1} parent=1 // pred_check
      _
    $region7: #{tpu_custom_call.1} parent=1 // pred_check_branch
      %19 = sbr.rel (0) target = $region9
    $region8: #{tpu_custom_call.1} parent=1 // pred_region
      %20 = dma.done [#allocation3], 256
    $region9: #{tpu_custom_call.1} parent=1 // pred_fallthru
      _
    %v21 = vld [vmem:[#allocation2] sm:$0xff]
    %v22 = vld [vmem:[#allocation2 + $0x8] sm:$0xff]
    %v23 = vsub.f32 %v21, 0.15
    %v24 = vsub.f32 %v22, 0.15
    %v25 = vmul.f32 %v23, %v23
    %v26 = vmul.f32 %v24, %v24
    %v27 = vmul.f32 %v25, -2222.2222
    %v28 = vmul.f32 %v26, -2222.2222
    %v29 = vmul.f32 %v27, 1.442695
    %v30 = vpow.pop %v29
    %v31 = vmul.f32 %v28, 1.442695
    %v32 = vpow.pop %v31
    %v33 = vmul.f32 %v30, 2.0
    %v34 = vmul.f32 %v32, 2.0
    %v35 = vsub.f32 %v33, 1.0
    %v36 = vsub.f32 %v34, 1.0
    %37 = vst [vmem:[#allocation5] sm:$0xff] %v35
    %38 = vst [vmem:[#allocation5 + $0x8] sm:$0xff] %v36
    // Predicated region
    $region10: #{tpu_custom_call.1} parent=1 // pred_check
      _
    $region11: #{tpu_custom_call.1} parent=1 // pred_check_branch
      %40 = sbr.rel (0) target = $region13
    $region12: #{tpu_custom_call.1} parent=1 // pred_region
      %s42 = ssub.s32 256, 256
      %43 = vsyncadd [#allocation4], %s42
      %s45 = sshll.u32 [#allocation5], 4
      %s46 = int_to_ptr.vmem [resolvable:$true] %s45
      %48 = dma.vmem_to_hbm [thread:$0]  %s46, 256, %s1, [#allocation4]
    $region13: #{tpu_custom_call.1} parent=1 // pred_fallthru
      _
    // Predicated region
    $region14: #{tpu_custom_call.1} parent=1 // pred_check
      _
    $region15: #{tpu_custom_call.1} parent=1 // pred_check_branch
      %50 = sbr.rel (0) target = $region17
    $region16: #{tpu_custom_call.1} parent=1 // pred_region
      %51 = dma.done [#allocation4], 256
    $region17: #{tpu_custom_call.1} parent=1 // pred_fallthru
      _
    %52 = vsyncpa [#allocation3], 1
    %53 = vsyncpa [#allocation4], 1

</llo_original>
